<compile_context>
chip_gen: v7x
topology: tpu7x:2x2x1
jax: 0.10.0
libtpu: 0.0.40
codegen_flags: <defaults>
</compile_context>

<pallas_src>
import functools

import jax
import jax.numpy as jnp
from jax.experimental import pallas as pl
from jax.experimental.pallas import tpu as pltpu

_LANES = 128
_SUBLANES = 8
_GROUP = _LANES * _SUBLANES          # elements per (8,128) vreg group
_LOG_CLAMP = -100.0                  # F.binary_cross_entropy clamps log terms at -100


# --------------------------------------------------------------------------
# elementwise math (runs on VPU/EUP inside the kernel)
# --------------------------------------------------------------------------
def _pow_modulator(one_m_pt, gamma):
    g = float(gamma)
    if g == int(g) and 0 <= int(g) <= 8:
        gi = int(g)
        if gi == 0:
            return jnp.ones_like(one_m_pt)
        mod = one_m_pt
        for _ in range(gi - 1):
            mod = mod * one_m_pt          # repeated VPU multiply, no EUP pow
        return mod
    return one_m_pt ** g


def _focal_elementwise(p_in, t_in, alpha, gamma, binary_targets):
    """Elementwise focal loss in f32 (matches the PyTorch forward)."""
    p = p_in.astype(jnp.float32)
    t = t_in.astype(jnp.float32)

    # 1 - p_t with p_t = p*t + (1-p)*(1-t)  ==>  1 - p_t = p + t - 2*p*t
    pt_prod = p * t
    one_m_pt = (p - pt_prod) + (t - pt_prod)

    if binary_targets:
        # Hard 0/1 targets: a single EUP log per element.
        p_t = 1.0 - one_m_pt
        ce = -jnp.maximum(jnp.log(p_t), _LOG_CLAMP)
    else:
        one_m_p = 1.0 - p
        log_p = jnp.maximum(jnp.log(p), _LOG_CLAMP)
        log_1mp = jnp.maximum(jnp.log(one_m_p), _LOG_CLAMP)
        # ce = -(t*log_p + (1-t)*log_1mp) = -(log_1mp + t*(log_p - log_1mp))
        ce = -(log_1mp + t * (log_p - log_1mp))

    loss = ce * _pow_modulator(one_m_pt, gamma)

    if alpha is not None and alpha >= 0:
        # alpha_t = a*t + (1-a)*(1-t) = (1-a) + (2a-1)*t   (constants fold at trace)
        alpha_t = (1.0 - float(alpha)) + (2.0 * float(alpha) - 1.0) * t
        loss = alpha_t * loss
    return loss


# --------------------------------------------------------------------------
# kernels
# --------------------------------------------------------------------------
def _focal_reduce_kernel(x_ref, t_ref, partial_ref, *, alpha, gamma, binary_targets):
    # x_ref/t_ref: (bg, 8, 128) -> emit a (1, 8, 128) lane-dense partial sum.
    loss = _focal_elementwise(x_ref[...], t_ref[...], alpha, gamma, binary_targets)
    partial_ref[...] = jnp.sum(loss, axis=0, keepdims=True)


def _focal_none_kernel(x_ref, t_ref, loss_ref, *, alpha, gamma, binary_targets):
    loss = _focal_elementwise(x_ref[...], t_ref[...], alpha, gamma, binary_targets)
    loss_ref[...] = loss.astype(loss_ref.dtype)


# --------------------------------------------------------------------------
# block-size / VMEM-budget selection (generation aware)
# --------------------------------------------------------------------------
def _vmem_capacity_bytes():
    try:
        info = pltpu.get_tpu_info()
        cap = getattr(info, "vmem_capacity_bytes", None)
        if cap:
            return int(cap)
    except Exception:
        pass
    return 64 << 20  # conservative (v7x per-TC); safe everywhere


def _pick_tiling(m8_raw, bytes_per_elem_live):
    """Return (grid_n, bg, vmem_limit_bytes)."""
    vmem_cap = _vmem_capacity_bytes()
    # 40% of VMEM for the double-buffered live blocks leaves ample headroom
    # for compiler scratch on every generation (v7x 64 MiB -> ~25 MiB budget,
    # v5e/v6e 128 MiB -> ~51 MiB budget).
    budget = int(vmem_cap * 0.4)
    group_live_bytes = 2 * _GROUP * bytes_per_elem_live   # double-buffered, per group
    cap = max(8, budget // group_live_bytes)
    cap = min(cap, 4096)

    grid_n = max(1, -(-m8_raw // cap))
    bg = -(-m8_raw // grid_n)          # <= cap, blocks as balanced as possible

    live_bytes = 2 * bg * _GROUP * bytes_per_elem_live
    vmem_limit = int(min(int(vmem_cap * 0.9),
                         max(live_bytes + (8 << 20), 16 << 20)))
    return grid_n, bg, vmem_limit


# --------------------------------------------------------------------------
# public wrapper
# --------------------------------------------------------------------------
def focal_loss(inputs, targets, *, alpha=0.25, gamma=2.0, reduction="mean",
               binary_targets=False):
    """Pallas implementation of FocalLoss.forward.

    inputs / targets: probabilities & targets, any shape (e.g. NCHW).
    Returns a scalar for 'mean'/'sum', elementwise array (original shape) for 'none'.
    `binary_targets=True` enables a single-log fast path (hard 0/1 labels only).
    """
    assert inputs.shape == targets.shape
    if reduction not in ("none", "mean", "sum"):
        raise ValueError(f"Invalid value for 'reduction': {reduction}")

    orig_shape = inputs.shape
    n_elem = int(inputs.size)
    xb = jnp.dtype(inputs.dtype).itemsize
    tb = jnp.dtype(targets.dtype).itemsize
    out_b = xb if reduction == "none" else 0

    m8_raw = max(1, -(-n_elem // _GROUP))
    grid_n, bg, vmem_limit = _pick_tiling(m8_raw, xb + tb + out_b)
    m8 = grid_n * bg
    pad_amt = m8 * _GROUP - n_elem

    # Native dtype; upcast happens inside the kernel after the VMEM load.
    x_flat = inputs.reshape(-1)
    t_flat = targets.reshape(-1)
    if pad_amt:
        # p=1, t=1 pads contribute exactly zero loss (ce=0, modulator=0).
        x_flat = jnp.concatenate(
            [x_flat, jnp.ones((pad_amt,), dtype=x_flat.dtype)])
        t_flat = jnp.concatenate(
            [t_flat, jnp.ones((pad_amt,), dtype=t_flat.dtype)])
    x3 = x_flat.reshape(m8, _SUBLANES, _LANES)
    t3 = t_flat.reshape(m8, _SUBLANES, _LANES)

    in_specs = [
        pl.BlockSpec((bg, _SUBLANES, _LANES), lambda i: (i, 0, 0)),
        pl.BlockSpec((bg, _SUBLANES, _LANES), lambda i: (i, 0, 0)),
    ]
    cparams = pltpu.CompilerParams(
        # every grid step is independent -> shardable across TensorCores
        dimension_semantics=("parallel",),
        vmem_limit_bytes=vmem_limit,
    )

    if reduction == "none":
        kernel = functools.partial(_focal_none_kernel, alpha=alpha, gamma=gamma,
                                   binary_targets=binary_targets)
        loss3 = pl.pallas_call(
            kernel,
            out_shape=jax.ShapeDtypeStruct((m8, _SUBLANES, _LANES), inputs.dtype),
            grid_spec=pltpu.PrefetchScalarGridSpec(
                num_scalar_prefetch=0,
                grid=(grid_n,),
                in_specs=in_specs,
                out_specs=pl.BlockSpec((bg, _SUBLANES, _LANES), lambda i: (i, 0, 0)),
            ),
            compiler_params=cparams,
        )(x3, t3)
        loss_flat = loss3.reshape(-1)
        if pad_amt:
            loss_flat = loss_flat[:n_elem]
        return loss_flat.reshape(orig_shape)

    # 'mean' / 'sum': no elementwise writeback; per-block lane-dense partial sums.
    kernel = functools.partial(_focal_reduce_kernel, alpha=alpha, gamma=gamma,
                               binary_targets=binary_targets)
    partials = pl.pallas_call(
        kernel,
        out_shape=jax.ShapeDtypeStruct((grid_n, _SUBLANES, _LANES), jnp.float32),
        grid_spec=pltpu.PrefetchScalarGridSpec(
            num_scalar_prefetch=0,
            grid=(grid_n,),
            in_specs=in_specs,
            out_specs=pl.BlockSpec((1, _SUBLANES, _LANES), lambda i: (i, 0, 0)),
        ),
        compiler_params=cparams,
    )(x3, t3)
    total = jnp.sum(partials)  # tiny f32 reduce in the wrapper (grid_n*4 KiB)
    if reduction == "sum":
        return total
    # Note: f32 count is inexact for n_elem > 2^24 (~1e-7 rel); matches PyTorch
    # which also divides in the accumulation dtype.
    return total / jnp.float32(n_elem)


# --------------------------------------------------------------------------
# pure-JAX reference (mirrors the PyTorch module)
# --------------------------------------------------------------------------
def _focal_loss_ref(inputs, targets, *, alpha=0.25, gamma=2.0, reduction="mean"):
    p = inputs.astype(jnp.float32)
    t = targets.astype(jnp.float32)
    ce = -(t * jnp.maximum(jnp.log(p), -100.0)
           + (1 - t) * jnp.maximum(jnp.log(1 - p), -100.0))
    p_t = p * t + (1 - p) * (1 - t)
    loss = ce * (1 - p_t) ** gamma
    if alpha is not None and alpha >= 0:
        loss = (alpha * t + (1 - alpha) * (1 - t)) * loss
    if reduction == "none":
        return loss
    elif reduction == "sum":
        return loss.sum()
    else:
        return loss.mean()


if __name__ == "__main__":
    key = jax.random.PRNGKey(0)
    k1, k2, k3, k4 = jax.random.split(key, 4)

    # small NCHW-shaped probabilities / binary targets: (B=2, C=4, H=16, W=16)
    B, C, H, W = 2, 4, 16, 16
    inputs = jax.nn.sigmoid(jax.random.normal(k1, (B, C, H, W), jnp.float32))
    targets = (jax.random.uniform(k2, (B, C, H, W)) > 0.5).astype(jnp.float32)

    out_mean = focal_loss(inputs, targets, alpha=0.25, gamma=2.0, reduction="mean")
    out_sum = focal_loss(inputs, targets, alpha=0.25, gamma=2.0, reduction="sum")
    out_none = focal_loss(inputs, targets, alpha=0.25, gamma=2.0, reduction="none")
    out_mean_fast = focal_loss(inputs, targets, alpha=0.25, gamma=2.0,
                               reduction="mean", binary_targets=True)
    jax.block_until_ready((out_mean, out_sum, out_none, out_mean_fast))

    ref_mean = _focal_loss_ref(inputs, targets, alpha=0.25, gamma=2.0, reduction="mean")
    ref_sum = _focal_loss_ref(inputs, targets, alpha=0.25, gamma=2.0, reduction="sum")
    ref_none = _focal_loss_ref(inputs, targets, alpha=0.25, gamma=2.0, reduction="none")

    assert jnp.allclose(out_mean, ref_mean, rtol=1e-4, atol=1e-5), (out_mean, ref_mean)
    assert jnp.allclose(out_sum, ref_sum, rtol=1e-4, atol=1e-3), (out_sum, ref_sum)
    assert jnp.allclose(out_none, ref_none, rtol=1e-4, atol=1e-5)
    assert jnp.allclose(out_mean_fast, ref_mean, rtol=1e-4, atol=1e-5), (
        out_mean_fast, ref_mean)

    # odd (non-multiple-of-1024) shape exercises the cdiv + pad path
    inputs_odd = jax.nn.sigmoid(jax.random.normal(k3, (3, 5, 7, 11), jnp.float32))
    targets_odd = (jax.random.uniform(k4, (3, 5, 7, 11)) > 0.5).astype(jnp.float32)
    out_mean_odd = focal_loss(inputs_odd, targets_odd, alpha=0.25, gamma=2.0,
                              reduction="mean")
    out_none_odd = focal_loss(inputs_odd, targets_odd, alpha=0.25, gamma=2.0,
                              reduction="none")
    jax.block_until_ready((out_mean_odd, out_none_odd))
    ref_mean_odd = _focal_loss_ref(inputs_odd, targets_odd, alpha=0.25, gamma=2.0,
                                   reduction="mean")
    ref_none_odd = _focal_loss_ref(inputs_odd, targets_odd, alpha=0.25, gamma=2.0,
                                   reduction="none")
    assert jnp.allclose(out_mean_odd, ref_mean_odd, rtol=1e-4, atol=1e-5)
    assert jnp.allclose(out_none_odd, ref_none_odd, rtol=1e-4, atol=1e-5)

    print("KERNEL_OK")
</pallas_src>

<mosaic_0001>
module attributes {stable_mosaic.version = 11 : i64} {
  func.func @_focal_reduce_kernel(%arg0: i32, %arg1: memref<2x8x128xf32, #tpu.memory_space<vmem>>, %arg2: memref<2x8x128xf32, #tpu.memory_space<vmem>>, %arg3: memref<1x8x128xf32, #tpu.memory_space<vmem>>) attributes {dimension_semantics = [#tpu.dimension_semantics<parallel>], iteration_bounds = array<i64: 1>, scalar_prefetch = 0 : i64, scratch_operands = 0 : i64, tpu.core_type = #tpu.core_type<tc>, window_params = [{transform_indices = @transform_0, window_bounds = array<i64: 2, 8, 128>}, {transform_indices = @transform_1, window_bounds = array<i64: 2, 8, 128>}, {transform_indices = @transform_2, window_bounds = array<i64: 1, 8, 128>}]} {
    %c0 = arith.constant 0 : index
    %c0_0 = arith.constant 0 : index
    %c0_1 = arith.constant 0 : index
    %0 = vector.load %arg1[%c0, %c0_0, %c0_1] : memref<2x8x128xf32, #tpu.memory_space<vmem>>, vector<2x8x128xf32>
    %c0_2 = arith.constant 0 : index
    %c0_3 = arith.constant 0 : index
    %c0_4 = arith.constant 0 : index
    %1 = vector.load %arg2[%c0_2, %c0_3, %c0_4] : memref<2x8x128xf32, #tpu.memory_space<vmem>>, vector<2x8x128xf32>
    %2 = arith.mulf %0, %1 : vector<2x8x128xf32>
    %3 = arith.subf %0, %2 : vector<2x8x128xf32>
    %4 = arith.subf %1, %2 : vector<2x8x128xf32>
    %5 = arith.addf %3, %4 : vector<2x8x128xf32>
    %cst = arith.constant 1.000000e+00 : f32
    %6 = vector.broadcast %cst : f32 to vector<2x8x128xf32>
    %7 = arith.subf %6, %0 : vector<2x8x128xf32>
    %8 = math.log %0 : vector<2x8x128xf32>
    %cst_5 = arith.constant -1.000000e+02 : f32
    %9 = vector.broadcast %cst_5 : f32 to vector<2x8x128xf32>
    %10 = arith.maximumf %8, %9 : vector<2x8x128xf32>
    %11 = math.log %7 : vector<2x8x128xf32>
    %cst_6 = arith.constant -1.000000e+02 : f32
    %12 = vector.broadcast %cst_6 : f32 to vector<2x8x128xf32>
    %13 = arith.maximumf %11, %12 : vector<2x8x128xf32>
    %14 = arith.subf %10, %13 : vector<2x8x128xf32>
    %15 = arith.mulf %1, %14 : vector<2x8x128xf32>
    %16 = arith.addf %13, %15 : vector<2x8x128xf32>
    %cst_7 = arith.constant 0.000000e+00 : f32
    %17 = vector.broadcast %cst_7 : f32 to vector<2x8x128xf32>
    %18 = arith.subf %17, %16 : vector<2x8x128xf32>
    %19 = arith.mulf %5, %5 : vector<2x8x128xf32>
    %20 = arith.mulf %18, %19 : vector<2x8x128xf32>
    %cst_8 = arith.constant -5.000000e-01 : f32
    %21 = vector.broadcast %cst_8 : f32 to vector<2x8x128xf32>
    %22 = arith.mulf %21, %1 : vector<2x8x128xf32>
    %cst_9 = arith.constant 7.500000e-01 : f32
    %23 = vector.broadcast %cst_9 : f32 to vector<2x8x128xf32>
    %24 = arith.addf %23, %22 : vector<2x8x128xf32>
    %25 = arith.mulf %24, %20 : vector<2x8x128xf32>
    %cst_10 = arith.constant dense<0.000000e+00> : vector<8x128xf32>
    %26 = vector.multi_reduction <add>, %25, %cst_10 [0] : vector<2x8x128xf32> to vector<8x128xf32>
    %27 = vector.shape_cast %26 : vector<8x128xf32> to vector<1x8x128xf32>
    %c0_11 = arith.constant 0 : index
    %c0_12 = arith.constant 0 : index
    %c0_13 = arith.constant 0 : index
    %28 = vector.load %arg3[%c0_11, %c0_12, %c0_13] : memref<1x8x128xf32, #tpu.memory_space<vmem>>, vector<1x8x128xf32>
    tpu.vector_store %arg3[%c0_11, %c0_12, %c0_13], %27 {strides = array<i32>} : memref<1x8x128xf32, #tpu.memory_space<vmem>>, vector<1x8x128xf32>,
    return
  }
  func.func @transform_0(%arg0: i32) -> (i32, i32, i32) {
    %c0_i32 = arith.constant 0 : i32
    %c0_i32_0 = arith.constant 0 : i32
    %c0_i32_1 = arith.constant 0 : i32
    return %arg0, %c0_i32, %c0_i32_0 : i32, i32, i32
  }
  func.func @transform_1(%arg0: i32) -> (i32, i32, i32) {
    %c0_i32 = arith.constant 0 : i32
    %c0_i32_0 = arith.constant 0 : i32
    %c0_i32_1 = arith.constant 0 : i32
    return %arg0, %c0_i32, %c0_i32_0 : i32, i32, i32
  }
  func.func @transform_2(%arg0: i32) -> (i32, i32, i32) {
    %c0_i32 = arith.constant 0 : i32
    %c0_i32_0 = arith.constant 0 : i32
    %c0_i32_1 = arith.constant 0 : i32
    return %arg0, %c0_i32, %c0_i32_0 : i32, i32, i32
  }
}

</mosaic_0001>

<llo_original>
// kernel: tpu_custom_call.1
$region0: #{tpu_custom_call.1}
  #allocation0 [shape = 'u32[]', space=smem, size = 0x4, offset = 0x4, fixed_abs, tag = 'smem constant byte address 0x4 - core index']
  #allocation1 [shape = 'u32[144,128]{1,0:T(1,128)}', space=vmem, size = 0x12000, scoped, tag = 'internal scratch']
  %s0 = inlined_call_operand.hbm [shape: f32[2,8,128], index: 0, kind: input, shape index: {}]
  %s1 = inlined_call_operand.hbm [shape: f32[2,8,128], index: 1, kind: input, shape index: {}]
  %s2 = inlined_call_operand.hbm [shape: f32[1,8,128], index: 2, kind: output, shape index: {}]
  %s3 = sld [smem:[#allocation0]]
  $region26: #{tpu_custom_call.1} parent=0
    _
  %s5 = ssub.s32 1, %s3
  %s6 = scalar_select 0, %s5, %s3
  $region1: #{tpu_custom_call.1} parent=0
    #allocation2 [shape = 'u8[8192]{0}', space=vmem, size = 0x2000, scoped, tag = 'input window, operand 0, single buffered']
    #allocation3 [shape = 's32[1]{0}', space=sflag, size = 0x4, scoped, tag = 'scoped memory for tpu_custom_call.1']
    #allocation4 [shape = 's32[1]{0}', space=sflag, size = 0x4, scoped, tag = 'scoped memory for tpu_custom_call.1']
    #allocation5 [shape = 'u8[8192]{0}', space=vmem, size = 0x2000, scoped, tag = 'input window, operand 1, single buffered']
    #allocation6 [shape = 's32[1]{0}', space=sflag, size = 0x4, scoped, tag = 'scoped memory for tpu_custom_call.1']
    #allocation7 [shape = 'u8[4096]{0}', space=vmem, size = 0x1000, scoped, tag = 'output window, operand 0, single buffered']
    %7 = vsyncpa [#allocation3], 0
    %8 = vsyncpa [#allocation6], 0
    %9 = vsyncpa [#allocation4], 0
    // Predicated region
    $region2: #{tpu_custom_call.1} parent=1 // pred_check
      _
    $region3: #{tpu_custom_call.1} parent=1 // pred_check_branch
      %11 = sbr.rel (0) target = $region5
    $region4: #{tpu_custom_call.1} parent=1 // pred_region
      %s13 = ssub.s32 256, 256
      %14 = vsyncadd [#allocation3], %s13
      %s15 = sshll.u32 [#allocation2], 4
      %s16 = int_to_ptr.vmem [resolvable:$true] %s15
      %21 = dma.hbm_to_vmem [thread:$0]  %s0, 256, %s16, [#allocation3], 128, 128, 8
    $region5: #{tpu_custom_call.1} parent=1 // pred_fallthru
      _
    // Predicated region
    $region6: #{tpu_custom_call.1} parent=1 // pred_check
      _
    $region7: #{tpu_custom_call.1} parent=1 // pred_check_branch
      %23 = sbr.rel (0) target = $region9
    $region8: #{tpu_custom_call.1} parent=1 // pred_region
      %s25 = ssub.s32 256, 256
      %26 = vsyncadd [#allocation6], %s25
      %s27 = sshll.u32 [#allocation5], 4
      %s28 = int_to_ptr.vmem [resolvable:$true] %s27
      %33 = dma.hbm_to_vmem [thread:$0]  %s1, 256, %s28, [#allocation6], 128, 128, 8
    $region9: #{tpu_custom_call.1} parent=1 // pred_fallthru
      _
    // Predicated region
    $region10: #{tpu_custom_call.1} parent=1 // pred_check
      _
    $region11: #{tpu_custom_call.1} parent=1 // pred_check_branch
      %35 = sbr.rel (0) target = $region13
    $region12: #{tpu_custom_call.1} parent=1 // pred_region
      %36 = dma.done [#allocation3], 256
    $region13: #{tpu_custom_call.1} parent=1 // pred_fallthru
      _
    // Predicated region
    $region14: #{tpu_custom_call.1} parent=1 // pred_check
      _
    $region15: #{tpu_custom_call.1} parent=1 // pred_check_branch
      %38 = sbr.rel (0) target = $region17
    $region16: #{tpu_custom_call.1} parent=1 // pred_region
      %39 = dma.done [#allocation6], 256
    $region17: #{tpu_custom_call.1} parent=1 // pred_fallthru
      _
    %v40 = vld [vmem:[#allocation2] sm:$0xff]
    %v41 = vld [vmem:[#allocation2 + $0x8] sm:$0xff]
    %v42 = vld [vmem:[#allocation5] sm:$0xff]
    %v43 = vld [vmem:[#allocation5 + $0x8] sm:$0xff]
    %v44 = vmul.f32 %v40, %v42
    %v45 = vmul.f32 %v41, %v43
    %v46 = vsub.f32 %v40, %v44
    %v47 = vsub.f32 %v41, %v45
    %v48 = vsub.f32 %v42, %v44
    %v49 = vsub.f32 %v43, %v45
    %v50 = vadd.f32 %v46, %v48
    %v51 = vadd.f32 %v47, %v49
    %v52 = vsub.f32 1.0, %v40
    %v53 = vsub.f32 1.0, %v41
    %v54 = vlog2.pop %v40
    %v55 = vmul.f32 %v54, 0.6931472
    %v56 = vlog2.pop %v41
    %v57 = vmul.f32 %v56, 0.6931472
    %v58 = vmax.f32 %v55, -100.0
    %v59 = vmax.f32 %v57, -100.0
    %v60 = vlog2.pop %v52
    %v61 = vmul.f32 %v60, 0.6931472
    %v62 = vlog2.pop %v53
    %v63 = vmul.f32 %v62, 0.6931472
    %v64 = vmax.f32 %v61, -100.0
    %v65 = vmax.f32 %v63, -100.0
    %v66 = vsub.f32 %v58, %v64
    %v67 = vsub.f32 %v59, %v65
    %v68 = vmul.f32 %v42, %v66
    %v69 = vmul.f32 %v43, %v67
    %v70 = vadd.f32 %v64, %v68
    %v71 = vadd.f32 %v65, %v69
    %v72 = vsub.f32 0.0, %v70
    %v73 = vsub.f32 0.0, %v71
    %v74 = vmul.f32 %v50, %v50
    %v75 = vmul.f32 %v51, %v51
    %v76 = vmul.f32 %v72, %v74
    %v77 = vmul.f32 %v73, %v75
    %v78 = vmul.f32 %v42, -0.5
    %v79 = vmul.f32 %v43, -0.5
    %v80 = vadd.f32 %v78, 0.75
    %v81 = vadd.f32 %v79, 0.75
    %v82 = vmul.f32 %v80, %v76
    %v83 = vmul.f32 %v81, %v77
    %v84 = vadd.f32 %v82, %v83
    %85 = vst [vmem:[#allocation7] sm:$0xff] %v84
    // Predicated region
    $region18: #{tpu_custom_call.1} parent=1 // pred_check
      _
    $region19: #{tpu_custom_call.1} parent=1 // pred_check_branch
      %87 = sbr.rel (0) target = $region21
    $region20: #{tpu_custom_call.1} parent=1 // pred_region
      %s89 = ssub.s32 128, 128
      %90 = vsyncadd [#allocation4], %s89
      %s92 = sshll.u32 [#allocation7], 4
      %s93 = int_to_ptr.vmem [resolvable:$true] %s92
      %95 = dma.vmem_to_hbm [thread:$0]  %s93, 128, %s2, [#allocation4]
    $region21: #{tpu_custom_call.1} parent=1 // pred_fallthru
      _
    // Predicated region
    $region22: #{tpu_custom_call.1} parent=1 // pred_check
      _
    $region23: #{tpu_custom_call.1} parent=1 // pred_check_branch
      %97 = sbr.rel (0) target = $region25
    $region24: #{tpu_custom_call.1} parent=1 // pred_region
      %98 = dma.done [#allocation4], 128
    $region25: #{tpu_custom_call.1} parent=1 // pred_fallthru
      _
    %99 = vsyncpa [#allocation3], 1
    %100 = vsyncpa [#allocation6], 1
    %101 = vsyncpa [#allocation4], 1

</llo_original>
